<compile_context>
chip_gen: v7x
topology: tpu7x:2x2x1
jax: 0.10.0
libtpu: 0.0.40
codegen_flags: <defaults>
</compile_context>

<pallas_src>
import functools
import math

import jax
import jax.numpy as jnp
from jax.experimental import pallas as pl
from jax.experimental.pallas import tpu as pltpu


def _xgcn_kernel(adj_ref, x_ref, w_ref, b_ref, out_ref):
    # adj_ref: (tm, tk)   x_ref: (tk, d_in)   w_ref: (d_in, d_out_p)
    # b_ref:   (1, d_out_p)                   out_ref: (tm, d_out_p)
    j = pl.program_id(1)

    @pl.when(j == 0)
    def _():
        # Initialize the resident output block with the bias (accumulator init).
        out_ref[...] = jnp.broadcast_to(b_ref[...], out_ref.shape)

    # support tile = x[j_tile] @ W  (stays in VMEM, never written to HBM)
    support = jnp.dot(x_ref[...], w_ref[...], preferred_element_type=jnp.float32)
    # accumulate adj[i_tile, j_tile] @ support directly into the output block
    out_ref[...] += jnp.dot(adj_ref[...], support,
                            preferred_element_type=jnp.float32)


def _round_up(v, m):
    return ((v + m - 1) // m) * m


def xgraph_convolution(x, adj, weight, bias=None, *, tm=128, tk=128):
    """out = adj @ (x @ weight) + bias  (dense adj; equals torch.spmm here)."""
    N, d_in = x.shape
    d_out = weight.shape[1]

    x = x.astype(jnp.float32)
    adj = adj.astype(jnp.float32)
    weight = weight.astype(jnp.float32)
    if bias is None:
        bias = jnp.zeros((d_out,), jnp.float32)
    bias = jnp.asarray(bias, jnp.float32).reshape(1, d_out)

    # Pad N to the tile size (lcm of tm, tk) and d_out to a lane-dense
    # multiple of 128 so output stores are unmasked.
    n_tile = tm * tk // math.gcd(tm, tk)
    n_pad = _round_up(N, n_tile)
    do_pad = _round_up(d_out, 128)

    adj_p = jnp.pad(adj, ((0, n_pad - N), (0, n_pad - N)))
    x_p = jnp.pad(x, ((0, n_pad - N), (0, 0)))
    w_p = jnp.pad(weight, ((0, 0), (0, do_pad - d_out)))
    b_p = jnp.pad(bias, ((0, 0), (0, do_pad - d_out)))

    grid = (n_pad // tm, n_pad // tk)

    out = pl.pallas_call(
        _xgcn_kernel,
        out_shape=jax.ShapeDtypeStruct((n_pad, do_pad), jnp.float32),
        grid_spec=pltpu.PrefetchScalarGridSpec(
            num_scalar_prefetch=0,
            grid=grid,
            in_specs=[
                pl.BlockSpec((tm, tk), lambda i, j: (i, j)),         # adj tile
                pl.BlockSpec((tk, d_in), lambda i, j: (j, 0)),       # x rows
                pl.BlockSpec((d_in, do_pad), lambda i, j: (0, 0)),   # weight (invariant)
                pl.BlockSpec((1, do_pad), lambda i, j: (0, 0)),      # bias   (invariant)
            ],
            out_specs=pl.BlockSpec((tm, do_pad), lambda i, j: (i, 0)),
        ),
        compiler_params=pltpu.CompilerParams(
            dimension_semantics=("parallel", "arbitrary")),
    )(adj_p, x_p, w_p, b_p)

    return out[:N, :d_out]


def _reference(x, adj, weight, bias):
    out = adj @ (x @ weight)
    return out + bias if bias is not None else out


def _init_params(key, in_features, out_features):
    """Mimics XGraphConvolution.reset_parameters: uniform(-stdv, stdv)."""
    stdv = 1.0 / math.sqrt(out_features)
    kw, kb = jax.random.split(key)
    weight = jax.random.uniform(kw, (in_features, out_features), jnp.float32,
                                -stdv, stdv)
    bias = jax.random.uniform(kb, (out_features,), jnp.float32, -stdv, stdv)
    return weight, bias


if __name__ == "__main__":
    N = 200              # number of graph nodes (non-multiple of 128 on purpose)
    in_features = 48
    out_features = 96

    key = jax.random.PRNGKey(0)
    k_adj, k_x, k_p = jax.random.split(key, 3)

    # dense symmetric 0/1 adjacency (torch.spmm on a dense adj == matmul)
    adj_rand = (jax.random.uniform(k_adj, (N, N)) > 0.7).astype(jnp.float32)
    adj = jnp.maximum(adj_rand, adj_rand.T)
    x = jax.random.normal(k_x, (N, in_features), dtype=jnp.float32)

    weight, bias = _init_params(k_p, in_features, out_features)

    out = xgraph_convolution(x, adj, weight, bias)
    out = jax.block_until_ready(out)

    ref = _reference(x, adj, weight, bias)
    if not jnp.allclose(out, ref, atol=1e-3, rtol=1e-4):
        raise AssertionError(
            f"mismatch vs reference: max abs err {jnp.max(jnp.abs(out - ref))}")

    print("KERNEL_OK")
</pallas_src>

<mosaic_0001>
module attributes {stable_mosaic.version = 11 : i64} {
  func.func @_xgcn_kernel(%arg0: i32, %arg1: i32, %arg2: memref<128x128xf32, #tpu.memory_space<vmem>>, %arg3: memref<128x48xf32, #tpu.memory_space<vmem>>, %arg4: memref<48x128xf32, #tpu.memory_space<vmem>>, %arg5: memref<1x128xf32, #tpu.memory_space<vmem>>, %arg6: memref<128x128xf32, #tpu.memory_space<vmem>>) attributes {dimension_semantics = [#tpu.dimension_semantics<parallel>, #tpu.dimension_semantics<arbitrary>], iteration_bounds = array<i64: 2, 2>, scalar_prefetch = 0 : i64, scratch_operands = 0 : i64, tpu.core_type = #tpu.core_type<tc>, window_params = [{transform_indices = @transform_0, window_bounds = array<i64: 128, 128>}, {transform_indices = @transform_1, window_bounds = array<i64: 128, 48>}, {pipeline_mode = #tpu.pipeline_mode<synchronous>, transform_indices = @transform_2, window_bounds = array<i64: 48, 128>}, {pipeline_mode = #tpu.pipeline_mode<synchronous>, transform_indices = @transform_3, window_bounds = array<i64: 1, 128>}, {transform_indices = @transform_4, window_bounds = array<i64: 128, 128>}]} {
    %c0_i32 = arith.constant 0 : i32
    %0 = arith.cmpi eq, %arg1, %c0_i32 : i32
    %1 = arith.extui %0 : i1 to i32
    %c0_i32_0 = arith.constant 0 : i32
    %2 = arith.cmpi ne, %1, %c0_i32_0 : i32
    scf.if %2 {
      %c0_11 = arith.constant 0 : index
      %c0_12 = arith.constant 0 : index
      %11 = vector.load %arg5[%c0_11, %c0_12] : memref<1x128xf32, #tpu.memory_space<vmem>>, vector<1x128xf32>
      %12 = vector.shape_cast %11 : vector<1x128xf32> to vector<1x128xf32>
      %13 = vector.broadcast %12 : vector<1x128xf32> to vector<128x128xf32>
      %c0_13 = arith.constant 0 : index
      %c0_14 = arith.constant 0 : index
      %14 = vector.load %arg6[%c0_13, %c0_14] : memref<128x128xf32, #tpu.memory_space<vmem>>, vector<128x128xf32>
      tpu.vector_store %arg6[%c0_13, %c0_14], %13 {strides = array<i32>} : memref<128x128xf32, #tpu.memory_space<vmem>>, vector<128x128xf32>,
    } else {
    }
    %c0 = arith.constant 0 : index
    %c0_1 = arith.constant 0 : index
    %3 = vector.load %arg3[%c0, %c0_1] : memref<128x48xf32, #tpu.memory_space<vmem>>, vector<128x48xf32>
    %c0_2 = arith.constant 0 : index
    %c0_3 = arith.constant 0 : index
    %4 = vector.load %arg4[%c0_2, %c0_3] : memref<48x128xf32, #tpu.memory_space<vmem>>, vector<48x128xf32>
    %cst = arith.constant dense<0.000000e+00> : vector<128x128xf32>
    %5 = tpu.matmul %3, %4, %cst {dimension_numbers = #tpu.dot_dimension_numbers<[1], [0], [0], [1], [0, 0, 1, 1], [], []>} : vector<128x48xf32>, vector<48x128xf32>, vector<128x128xf32> -> vector<128x128xf32>
    %c0_4 = arith.constant 0 : index
    %c0_5 = arith.constant 0 : index
    %6 = vector.load %arg6[%c0_4, %c0_5] : memref<128x128xf32, #tpu.memory_space<vmem>>, vector<128x128xf32>
    %c0_6 = arith.constant 0 : index
    %c0_7 = arith.constant 0 : index
    %7 = vector.load %arg2[%c0_6, %c0_7] : memref<128x128xf32, #tpu.memory_space<vmem>>, vector<128x128xf32>
    %cst_8 = arith.constant dense<0.000000e+00> : vector<128x128xf32>
    %8 = tpu.matmul %7, %5, %cst_8 {dimension_numbers = #tpu.dot_dimension_numbers<[1], [0], [0], [1], [0, 0, 1, 1], [], []>} : vector<128x128xf32>, vector<128x128xf32>, vector<128x128xf32> -> vector<128x128xf32>
    %9 = arith.addf %6, %8 : vector<128x128xf32>
    %c0_9 = arith.constant 0 : index
    %c0_10 = arith.constant 0 : index
    %10 = vector.load %arg6[%c0_9, %c0_10] : memref<128x128xf32, #tpu.memory_space<vmem>>, vector<128x128xf32>
    tpu.vector_store %arg6[%c0_9, %c0_10], %9 {strides = array<i32>} : memref<128x128xf32, #tpu.memory_space<vmem>>, vector<128x128xf32>,
    return
  }
  func.func @transform_0(%arg0: i32, %arg1: i32) -> (i32, i32) {
    %c0_i32 = arith.constant 0 : i32
    return %arg0, %arg1 : i32, i32
  }
  func.func @transform_1(%arg0: i32, %arg1: i32) -> (i32, i32) {
    %c0_i32 = arith.constant 0 : i32
    %c0_i32_0 = arith.constant 0 : i32
    return %arg1, %c0_i32 : i32, i32
  }
  func.func @transform_2(%arg0: i32, %arg1: i32) -> (i32, i32) {
    %c0_i32 = arith.constant 0 : i32
    %c0_i32_0 = arith.constant 0 : i32
    %c0_i32_1 = arith.constant 0 : i32
    return %c0_i32, %c0_i32_0 : i32, i32
  }
  func.func @transform_3(%arg0: i32, %arg1: i32) -> (i32, i32) {
    %c0_i32 = arith.constant 0 : i32
    %c0_i32_0 = arith.constant 0 : i32
    %c0_i32_1 = arith.constant 0 : i32
    return %c0_i32, %c0_i32_0 : i32, i32
  }
  func.func @transform_4(%arg0: i32, %arg1: i32) -> (i32, i32) {
    %c0_i32 = arith.constant 0 : i32
    %c0_i32_0 = arith.constant 0 : i32
    return %arg0, %c0_i32 : i32, i32
  }
}

</mosaic_0001>

<llo_original>
// kernel: tpu_custom_call.1
$region0: #{tpu_custom_call.1}
  #allocation0 [shape = 'u32[]', space=smem, size = 0x4, offset = 0x4, fixed_abs, tag = 'smem constant byte address 0x4 - core index']
  #allocation1 [shape = 'u32[144,128]{1,0:T(1,128)}', space=vmem, size = 0x12000, scoped, tag = 'internal scratch']
  %s0 = inlined_call_operand.hbm [shape: f32[256,256], index: 0, kind: input, shape index: {}]
  %s1 = inlined_call_operand.vmem [shape: f32[256,48], index: 1, kind: input, shape index: {}]
  %s2 = inlined_call_operand.vmem [shape: f32[48,128], index: 2, kind: input, shape index: {}]
  %s3 = inlined_call_operand.vmem [shape: f32[1,128], index: 3, kind: input, shape index: {}]
  %s4 = inlined_call_operand.hbm [shape: f32[256,128], index: 4, kind: output, shape index: {}]
  %s5 = sld [smem:[#allocation0]]
  $region57: #{tpu_custom_call.1} parent=0
    _
  %s7 = ssub.s32 1, %s5
  %s8 = scalar_select 0, %s7, %s5
  $region1: #{tpu_custom_call.1} parent=0
    #allocation2 [shape = 'u8[131072]{0}', space=vmem, size = 0x20000, scoped, tag = 'input window, operand 0']
    #allocation3 [shape = 's32[2]{0}', space=sflag, size = 0x8, scoped, tag = 'scoped memory for tpu_custom_call.1']
    #allocation4 [shape = 's32[2]{0}', space=sflag, size = 0x8, scoped, tag = 'scoped memory for tpu_custom_call.1']
    #allocation5 [shape = 'u8[131072]{0}', space=vmem, size = 0x20000, scoped, tag = 'output window, operand 0']
    %9 = vsyncpa [#allocation3], 0
    %s10 = scalar_lea.sflag [#allocation3], 1
    %11 = vsyncpa %s10, 0
    %12 = vsyncpa [#allocation4], 0
    %s13 = scalar_lea.sflag [#allocation4], 1
    %14 = vsyncpa %s13, 0
    loop: start=0, step=1, limit=6
    $region2: #{tpu_custom_call.1} parent=1 // loop_pre_header
      _
    $region3: #{tpu_custom_call.1} parent=1 // loop_header
      %s16 = sphi 0, %s20
      %p17 = scmp.ge.s32.totalorder %s16, 6
      %s23 = sphi 0, %s35
      %s24 = sphi 0, %s31
      %s25 = sphi 0, %s23
      %s26 = sphi 0, %s24
      %s27 = sphi 0, %s25
      %s28 = sphi 0, %s26
      %s40 = sphi 0, %s42
      %s43 = sphi 0, %s40
      %s44 = sphi 0, %s43
      %s60 = sphi 0, %s44
      %s66 = sphi 0, %s68
      %s69 = sphi 0, %s66
      %s70 = sphi 0, %s69
      %s86 = sphi 0, %s70
      %s90 = sphi 0, %s90
      %s92 = sphi 0, %s90
      %s93 = sphi 0, %s92
      %s107 = sphi 0, %s93
      %s111 = sphi 0, %s111
      %s113 = sphi 0, %s111
      %s114 = sphi 0, %s113
      %s128 = sphi 0, %s114
      %s134 = sphi 0, %s136
      %s137 = sphi 0, %s134
      %s138 = sphi 0, %s137
      %s154 = sphi 0, %s138
    $region4: #{tpu_custom_call.1} parent=1 // loop_header_branch
      %19 = sbr.rel (%p17) target = $region8
    $region5: #{tpu_custom_call.1} parent=1 // loop_body
      %s21 = ssub.s32 %s16, 1
      %s22 = ssub.s32 %s16, 2
      %s29 = sadd.s32 1, %s24
      %p30 = scmp.ge.s32.totalorder %s29, 2
      %s31 = scalar_select %p30, 0, %s29
      %s32 = sadd.s32 1, %s23
      %s33 = scalar_select %p30, %s32, %s23
      %p34 = scmp.ge.s32.totalorder %s33, 2
      %s35 = scalar_select %p34, 0, %s33
      %s36 = ssub.s32 %s23, %s35
      %s37 = ssub.s32 %s24, %s31
      %s38 = sor.u32 %s36, %s37
      %p39 = scmp.eq.s32.totalorder %s38, 0
      %s41 = sadd.s32 %s40, 1
      %s42 = scalar_select %p39, %s40, %s41
      %p45 = pneg %p39
      %p46 = scmp.eq.s32.totalorder %s16, 3
      %p47 = por %p45, %p46
      %p48 = scmp.ne.s32.totalorder %s40, %s43
      %p49 = scmp.eq.s32.totalorder %s16, 0
      %p50 = por %p48, %p49
      %p51 = scmp.ne.s32.totalorder %s40, %s43
      %p52 = scmp.eq.s32.totalorder %s21, 3
      %p53 = por %p51, %p52
      %p54 = scmp.ne.s32.totalorder %s43, %s44
      %p55 = scmp.eq.s32.totalorder %s21, 0
      %p56 = por %p54, %p55
      %p57 = scmp.ne.s32.totalorder %s43, %s44
      %p58 = scmp.eq.s32.totalorder %s22, 3
      %p59 = por %p57, %p58
      %p61 = scmp.ne.s32.totalorder %s44, %s60
      %p62 = scmp.eq.s32.totalorder %s22, 0
      %p63 = por %p61, %p62
      %s64 = ssub.s32 %s24, %s31
      %p65 = scmp.eq.s32.totalorder %s64, 0
      %s67 = sadd.s32 %s66, 1
      %s68 = scalar_select %p65, %s66, %s67
      %p71 = pneg %p65
      %p72 = scmp.eq.s32.totalorder %s16, 3
      %p73 = por %p71, %p72
      %p74 = scmp.ne.s32.totalorder %s66, %s69
      %p75 = scmp.eq.s32.totalorder %s16, 0
      %p76 = por %p74, %p75
      %p77 = scmp.ne.s32.totalorder %s66, %s69
      %p78 = scmp.eq.s32.totalorder %s21, 3
      %p79 = por %p77, %p78
      %p80 = scmp.ne.s32.totalorder %s69, %s70
      %p81 = scmp.eq.s32.totalorder %s21, 0
      %p82 = por %p80, %p81
      %p83 = scmp.ne.s32.totalorder %s69, %s70
      %p84 = scmp.eq.s32.totalorder %s22, 3
      %p85 = por %p83, %p84
      %p87 = scmp.ne.s32.totalorder %s70, %s86
      %p88 = scmp.eq.s32.totalorder %s22, 0
      %p89 = por %p87, %p88
      %s91 = sadd.s32 %s90, 1
      %p94 = scmp.eq.s32.totalorder %s16, 3
      %p95 = scmp.ne.s32.totalorder %s90, %s92
      %p96 = scmp.eq.s32.totalorder %s16, 0
      %p97 = por %p95, %p96
      %p98 = scmp.ne.s32.totalorder %s90, %s92
      %p99 = scmp.eq.s32.totalorder %s21, 3
      %p100 = por %p98, %p99
      %p101 = scmp.ne.s32.totalorder %s92, %s93
      %p102 = scmp.eq.s32.totalorder %s21, 0
      %p103 = por %p101, %p102
      %p104 = scmp.ne.s32.totalorder %s92, %s93
      %p105 = scmp.eq.s32.totalorder %s22, 3
      %p106 = por %p104, %p105
      %p108 = scmp.ne.s32.totalorder %s93, %s107
      %p109 = scmp.eq.s32.totalorder %s22, 0
      %p110 = por %p108, %p109
      %s112 = sadd.s32 %s111, 1
      %p115 = scmp.eq.s32.totalorder %s16, 3
      %p116 = scmp.ne.s32.totalorder %s111, %s113
      %p117 = scmp.eq.s32.totalorder %s16, 0
      %p118 = por %p116, %p117
      %p119 = scmp.ne.s32.totalorder %s111, %s113
      %p120 = scmp.eq.s32.totalorder %s21, 3
      %p121 = por %p119, %p120
      %p122 = scmp.ne.s32.totalorder %s113, %s114
      %p123 = scmp.eq.s32.totalorder %s21, 0
      %p124 = por %p122, %p123
      %p125 = scmp.ne.s32.totalorder %s113, %s114
      %p126 = scmp.eq.s32.totalorder %s22, 3
      %p127 = por %p125, %p126
      %p129 = scmp.ne.s32.totalorder %s114, %s128
      %p130 = scmp.eq.s32.totalorder %s22, 0
      %p131 = por %p129, %p130
      %s132 = ssub.s32 %s23, %s35
      %p133 = scmp.eq.s32.totalorder %s132, 0
      %s135 = sadd.s32 %s134, 1
      %s136 = scalar_select %p133, %s134, %s135
      %p139 = pneg %p133
      %p140 = scmp.eq.s32.totalorder %s16, 3
      %p141 = por %p139, %p140
      %p142 = scmp.ne.s32.totalorder %s134, %s137
      %p143 = scmp.eq.s32.totalorder %s16, 0
      %p144 = por %p142, %p143
      %p145 = scmp.ne.s32.totalorder %s134, %s137
      %p146 = scmp.eq.s32.totalorder %s21, 3
      %p147 = por %p145, %p146
      %p148 = scmp.ne.s32.totalorder %s137, %s138
      %p149 = scmp.eq.s32.totalorder %s21, 0
      %p150 = por %p148, %p149
      %p151 = scmp.ne.s32.totalorder %s137, %s138
      %p152 = scmp.eq.s32.totalorder %s22, 3
      %p153 = por %p151, %p152
      %p155 = scmp.ne.s32.totalorder %s138, %s154
      %p156 = scmp.eq.s32.totalorder %s22, 0
      %p157 = por %p155, %p156
      %p158 = scmp.le.s32.totalorder 1, %s16
      %p159 = scmp.lt.s32.totalorder %s16, 5
      %p160 = pnand %p158, %p159
      %p161 = pneg %p160
      // Predicated region
      $region9: #{tpu_custom_call.1} parent=5 // pred_check
        _
      $region10: #{tpu_custom_call.1} parent=5 // pred_check_branch
        %163 = sbr.rel (%p160) target = $region12
      $region11: #{tpu_custom_call.1} parent=5 // pred_region
        %s164 = ssub.s32 %s16, 1
        // Predicated region
        $region13: #{tpu_custom_call.1} parent=11 // pred_check
          %p165 = pneg %p103
        $region14: #{tpu_custom_call.1} parent=11 // pred_check_branch
          %167 = sbr.rel (%p165) target = $region16
        $region15: #{tpu_custom_call.1} parent=11 // pred_region
          _
        $region16: #{tpu_custom_call.1} parent=11 // pred_fallthru
          _
        // Predicated region
        $region17: #{tpu_custom_call.1} parent=11 // pred_check
          %p168 = pneg %p124
        $region18: #{tpu_custom_call.1} parent=11 // pred_check_branch
          %170 = sbr.rel (%p168) target = $region20
        $region19: #{tpu_custom_call.1} parent=11 // pred_region
          _
        $region20: #{tpu_custom_call.1} parent=11 // pred_fallthru
          _
      $region12: #{tpu_custom_call.1} parent=5 // pred_fallthru
        _
      %p171 = scmp.lt.s32.totalorder %s16, 4
      // Predicated region
      $region21: #{tpu_custom_call.1} parent=5 // pred_check
        %p172 = pneg %p171
      $region22: #{tpu_custom_call.1} parent=5 // pred_check_branch
        %174 = sbr.rel (%p172) target = $region24
      $region23: #{tpu_custom_call.1} parent=5 // pred_region
        // Predicated region
        $region25: #{tpu_custom_call.1} parent=23 // pred_check
          %p175 = pneg %p50
        $region26: #{tpu_custom_call.1} parent=23 // pred_check_branch
          %177 = sbr.rel (%p175) target = $region28
        $region27: #{tpu_custom_call.1} parent=23 // pred_region
          %s178 = sand.u32 %s40, 1
          %s179 = scalar_lea.sflag [#allocation3], %s178
          %s180 = sand.u32 %s40, 1
          %s181 = smul.addr %s180, 128
          %s182 = scalar_lea.vmem [#allocation2], %s181
          %s183 = smul.u32 16, %s23
          %s185 = ssub.s32 2048, 2048
          %186 = vsyncadd %s179, %s185
          %s187 = smul.addr %s183, 2
          %s188 = sadd.s32 %s24, %s187
          %s189 = smul.addr %s188, 128
          %s190 = scalar_lea.hbm %s0, %s189
          %s191 = sshll.u32 %s182, 4
          %s192 = int_to_ptr.vmem [resolvable:$true] %s191
          %197 = dma.hbm_to_vmem [thread:$0]  %s190, 2048, %s192, %s179, 256, 128, 8
        $region28: #{tpu_custom_call.1} parent=23 // pred_fallthru
          _
        // Predicated region
        $region29: #{tpu_custom_call.1} parent=23 // pred_check
          %p198 = pneg %p76
        $region30: #{tpu_custom_call.1} parent=23 // pred_check_branch
          %200 = sbr.rel (%p198) target = $region32
        $region31: #{tpu_custom_call.1} parent=23 // pred_region
          %s201 = smul.u32 16, %s24
          %p202 = scmp.lt.s32.totalorder %s201, 31
          %s203 = scalar_select %p202, %s201, 31
          %s204 = smul.addr %s203, 8
          %s205 = scalar_lea.vmem %s1, %s204
          %s206 = smul.u32 16, %s24
        $region32: #{tpu_custom_call.1} parent=23 // pred_fallthru
          _
      $region24: #{tpu_custom_call.1} parent=5 // pred_fallthru
        _
      %p207 = scmp.le.s32.totalorder 1, %s16
      %p208 = scmp.lt.s32.totalorder %s16, 5
      %p209 = pnand %p207, %p208
      %p210 = pneg %p209
      // Predicated region
      $region33: #{tpu_custom_call.1} parent=5 // pred_check
        _
      $region34: #{tpu_custom_call.1} parent=5 // pred_check_branch
        %212 = sbr.rel (%p209) target = $region36
      $region35: #{tpu_custom_call.1} parent=5 // pred_region
        %s213 = ssub.s32 %s16, 1
        %s214 = sand.u32 %s43, 1
        %s215 = scalar_lea.sflag [#allocation3], %s214
        %s216 = sand.u32 %s43, 1
        %s217 = smul.addr %s216, 128
        %s218 = scalar_lea.vmem [#allocation2], %s217
        // Predicated region
        $region37: #{tpu_custom_call.1} parent=35 // pred_check
          %p219 = pneg %p56
        $region38: #{tpu_custom_call.1} parent=35 // pred_check_branch
          %221 = sbr.rel (%p219) target = $region40
        $region39: #{tpu_custom_call.1} parent=35 // pred_region
          %222 = dma.done %s215, 2048
        $region40: #{tpu_custom_call.1} parent=35 // pred_fallthru
          _
        %s223 = sand.u32 %s43, 1
        %s224 = scalar_lea.sflag [#allocation3], %s223
        %s225 = sand.u32 %s43, 1
        %s226 = smul.addr %s225, 128
        %s227 = scalar_lea.vmem [#allocation2], %s226
        %p228 = pneg %p56
        %p229 = pneg %p53
        %s230 = smul.u32 16, %s26
        %p231 = scmp.lt.s32.totalorder %s230, 31
        %s232 = scalar_select %p231, %s230, 31
        %s233 = smul.addr %s232, 8
        %s234 = scalar_lea.vmem %s1, %s233
        %p235 = pneg %p82
        %p236 = pneg %p79
        %p237 = pneg %p103
        %p238 = pneg %p100
        %p239 = pneg %p124
        %p240 = pneg %p121
        %p241 = pneg %p150
        %p242 = pneg %p147
        %s243 = sand.u32 %s137, 1
        %s244 = scalar_lea.sflag [#allocation4], %s243
        %s245 = sand.u32 %s137, 1
        %s246 = smul.addr %s245, 128
        %s247 = scalar_lea.vmem [#allocation5], %s246
        %s248 = smul.u32 16, %s25
        %s249 = smul.u32 16, %s26
        %p250 = scmp.lt.s32.totalorder %s249, 31
        %s251 = scalar_select %p250, %s249, 31
        %s252 = smul.addr %s251, 8
        %s253 = scalar_lea.vmem %s1, %s252
        %s254 = smul.u32 16, %s26
        %s255 = smul.u32 16, %s25
        %p256 = scmp.eq.s32.totalorder %s26, 0
        // Predicated region
        $region41: #{tpu_custom_call.1} parent=35 // pred_check
          %p257 = pneg %p256
        $region42: #{tpu_custom_call.1} parent=35 // pred_check_branch
          %259 = sbr.rel (%p257) target = $region44
        $region43: #{tpu_custom_call.1} parent=35 // pred_region
          %v260 = vld [vmem:[%s3] sm:$0x1]
          %v262 = vlaneseq
          %v263 = vshrl.u32 %v262, 7
          %v264 = vsub.s32 0, %v263
          %v265 = vrot.slane %v260, %v264
          %267 = vst [vmem:[%s247] sm:$0xff] %v265
          %268 = vst [vmem:[%s247 + $0x8] sm:$0xff] %v265
          %269 = vst [vmem:[%s247 + $0x10] sm:$0xff] %v265
          %270 = vst [vmem:[%s247 + $0x18] sm:$0xff] %v265
          %271 = vst [vmem:[%s247 + $0x20] sm:$0xff] %v265
          %272 = vst [vmem:[%s247 + $0x28] sm:$0xff] %v265
          %273 = vst [vmem:[%s247 + $0x30] sm:$0xff] %v265
          %274 = vst [vmem:[%s247 + $0x38] sm:$0xff] %v265
          %275 = vst [vmem:[%s247 + $0x40] sm:$0xff] %v265
          %276 = vst [vmem:[%s247 + $0x48] sm:$0xff] %v265
          %277 = vst [vmem:[%s247 + $0x50] sm:$0xff] %v265
          %278 = vst [vmem:[%s247 + $0x58] sm:$0xff] %v265
          %279 = vst [vmem:[%s247 + $0x60] sm:$0xff] %v265
          %280 = vst [vmem:[%s247 + $0x68] sm:$0xff] %v265
          %281 = vst [vmem:[%s247 + $0x70] sm:$0xff] %v265
          %282 = vst [vmem:[%s247 + $0x78] sm:$0xff] %v265
        $region44: #{tpu_custom_call.1} parent=35 // pred_fallthru
          _
        %v283 = vld [vmem:[%s253] sm:$0xff]
        %v284 = vld [vmem:[%s253 + $0x8] sm:$0xff]
        %v285 = vld [vmem:[%s253 + $0x10] sm:$0xff]
        %v286 = vld [vmem:[%s253 + $0x18] sm:$0xff]
        %v287 = vld [vmem:[%s253 + $0x20] sm:$0xff]
        %v288 = vld [vmem:[%s253 + $0x28] sm:$0xff]
        %v289 = vld [vmem:[%s253 + $0x30] sm:$0xff]
        %v290 = vld [vmem:[%s253 + $0x38] sm:$0xff]
        %v291 = vld [vmem:[%s253 + $0x40] sm:$0xff]
        %v292 = vld [vmem:[%s253 + $0x48] sm:$0xff]
        %v293 = vld [vmem:[%s253 + $0x50] sm:$0xff]
        %v294 = vld [vmem:[%s253 + $0x58] sm:$0xff]
        %v295 = vld [vmem:[%s253 + $0x60] sm:$0xff]
        %v296 = vld [vmem:[%s253 + $0x68] sm:$0xff]
        %v297 = vld [vmem:[%s253 + $0x70] sm:$0xff]
        %v298 = vld [vmem:[%s253 + $0x78] sm:$0xff]
        %v299 = vld [vmem:[%s2] sm:$0xff]
        %v300 = vld [vmem:[%s2 + $0x8] sm:$0xff]
        %v301 = vld [vmem:[%s2 + $0x10] sm:$0xff]
        %v302 = vld [vmem:[%s2 + $0x18] sm:$0xff]
        %v303 = vld [vmem:[%s2 + $0x20] sm:$0xff]
        %v304 = vld [vmem:[%s2 + $0x28] sm:$0xff]
        %vm305 = vcmask 392192
        %v307 = vsel %vm305, %v283, 0
        %v310 = vsel %vm305, %v284, 0
        %v313 = vsel %vm305, %v285, 0
        %v316 = vsel %vm305, %v286, 0
        %v319 = vsel %vm305, %v287, 0
        %v322 = vsel %vm305, %v288, 0
        %v325 = vsel %vm305, %v289, 0
        %v328 = vsel %vm305, %v290, 0
        %v331 = vsel %vm305, %v291, 0
        %v334 = vsel %vm305, %v292, 0
        %v337 = vsel %vm305, %v293, 0
        %v340 = vsel %vm305, %v294, 0
        %v343 = vsel %vm305, %v295, 0
        %v346 = vsel %vm305, %v296, 0
        %v349 = vsel %vm305, %v297, 0
        %v352 = vsel %vm305, %v298, 0
        %354 = vmatprep.subr.mxu0 0.0
        %355 = vmatpush1.msra.mxu0 %v299
        %356 = vmatprep.subr.mxu0 0.0
        %357 = vmatpush1.msra.mxu0 %v300
        %358 = vmatprep.subr.mxu0 0.0
        %359 = vmatpush1.msra.mxu0 %v301
        %360 = vmatprep.subr.mxu0 0.0
        %361 = vmatpush1.msra.mxu0 %v302
        %362 = vmatprep.subr.mxu0 0.0
        %363 = vmatpush1.msra.mxu0 %v303
        %364 = vmatprep.subr.mxu0 0.0
        %365 = vmatpush1.msra.mxu0 %v304
        %366 = vmatprep.subr.mxu0 0.0
        %367 = vmatpush1.msra.mxu0 0.0
        %368 = vmatprep.subr.mxu0 0.0
        %369 = vmatpush1.msra.mxu0 0.0
        %370 = vmatprep.subr.mxu0 0.0
        %371 = vmatpush1.msra.mxu0 0.0
        %372 = vmatprep.subr.mxu0 0.0
        %373 = vmatpush1.msra.mxu0 0.0
        %374 = vmatprep.subr.mxu0 0.0
        %375 = vmatpush1.msra.mxu0 0.0
        %376 = vmatprep.subr.mxu0 0.0
        %377 = vmatpush1.msra.mxu0 0.0
        %378 = vmatprep.subr.mxu0 0.0
        %379 = vmatpush1.msra.mxu0 0.0
        %380 = vmatprep.subr.mxu0 0.0
        %381 = vmatpush1.msra.mxu0 0.0
        %382 = vmatprep.subr.mxu0 0.0
        %383 = vmatpush1.msra.mxu0 0.0
        %384 = vmatprep.subr.mxu0 0.0
        %385 = vmatpush1.msra.mxu0 0.0
        %386 = vmatprep.subr.mxu0 0.0
        %387 = vmatpush1.msra.mxu0 0.0
        %388 = vmatprep.subr.mxu0 0.0
        %389 = vmatpush1.msra.mxu0 0.0
        %390 = vmatprep.subr.mxu0 0.0
        %391 = vmatpush1.msra.mxu0 0.0
        %392 = vmatprep.subr.mxu0 0.0
        %393 = vmatpush1.msra.mxu0 0.0
        %394 = vmatprep.subr.mxu0 0.0
        %395 = vmatpush1.msra.mxu0 0.0
        %396 = vmatprep.subr.mxu0 0.0
        %397 = vmatpush1.msra.mxu0 0.0
        %398 = vmatprep.subr.mxu0 0.0
        %399 = vmatpush1.msra.mxu0 0.0
        %400 = vmatprep.subr.mxu0 0.0
        %401 = vmatpush1.msra.mxu0 0.0
        %402 = vmatprep.subr.mxu0 0.0
        %403 = vmatpush1.msra.mxu0 0.0
        %404 = vmatprep.subr.mxu0 0.0
        %405 = vmatpush1.msra.mxu0 0.0
        %406 = vmatprep.subr.mxu0 0.0
        %407 = vmatpush1.msra.mxu0 0.0
        %408 = vmatprep.subr.mxu0 0.0
        %409 = vmatpush1.msra.mxu0 0.0
        %410 = vmatprep.subr.mxu0 0.0
        %411 = vmatpush1.msra.mxu0 0.0
        %412 = vmatprep.subr.mxu0 0.0
        %413 = vmatpush1.msra.mxu0 0.0
        %414 = vmatprep.subr.mxu0 0.0
        %415 = vmatpush1.msra.mxu0 0.0
        %416 = vmatprep.subr.mxu0 0.0
        %417 = vmatpush1.msra.mxu0 0.0
        %418 = vmatprep.mubr.f32.mxu0 0.0
        %419 = vmatmul.mubr.f32.gmra.mrb[0].mxu0 %v307
        %v420 = vpop.f32.mrb[0].mxu0
        %v421 = vadd.f32 0.0, %v420
        %v422 = vpop.f32.mrb[0].mxu0
        %423 = vmatprep.mubr.f32.mxu0 0.0
        %424 = vmatmul.mubr.f32.gmra.mrb[0].mxu0 %v310
        %v425 = vpop.f32.mrb[0].mxu0
        %v426 = vadd.f32 0.0, %v425
        %v427 = vpop.f32.mrb[0].mxu0
        %428 = vmatprep.mubr.f32.mxu0 0.0
        %429 = vmatmul.mubr.f32.gmra.mrb[0].mxu0 %v313
        %v430 = vpop.f32.mrb[0].mxu0
        %v431 = vadd.f32 0.0, %v430
        %v432 = vpop.f32.mrb[0].mxu0
        %433 = vmatprep.mubr.f32.mxu0 0.0
        %434 = vmatmul.mubr.f32.gmra.mrb[0].mxu0 %v316
        %v435 = vpop.f32.mrb[0].mxu0
        %v436 = vadd.f32 0.0, %v435
        %v437 = vpop.f32.mrb[0].mxu0
        %438 = vmatprep.mubr.f32.mxu0 0.0
        %439 = vmatmul.mubr.f32.gmra.mrb[0].mxu0 %v319
        %v440 = vpop.f32.mrb[0].mxu0
        %v441 = vadd.f32 0.0, %v440
        %v442 = vpop.f32.mrb[0].mxu0
        %443 = vmatprep.mubr.f32.mxu0 0.0
        %444 = vmatmul.mubr.f32.gmra.mrb[0].mxu0 %v322
        %v445 = vpop.f32.mrb[0].mxu0
        %v446 = vadd.f32 0.0, %v445
        %v447 = vpop.f32.mrb[0].mxu0
        %448 = vmatprep.mubr.f32.mxu0 0.0
        %449 = vmatmul.mubr.f32.gmra.mrb[0].mxu0 %v325
        %v450 = vpop.f32.mrb[0].mxu0
        %v451 = vadd.f32 0.0, %v450
        %v452 = vpop.f32.mrb[0].mxu0
        %453 = vmatprep.mubr.f32.mxu0 0.0
        %454 = vmatmul.mubr.f32.gmra.mrb[0].mxu0 %v328
        %v455 = vpop.f32.mrb[0].mxu0
        %v456 = vadd.f32 0.0, %v455
        %v457 = vpop.f32.mrb[0].mxu0
        %458 = vmatprep.mubr.f32.mxu0 0.0
        %459 = vmatmul.mubr.f32.gmra.mrb[0].mxu0 %v331
        %v460 = vpop.f32.mrb[0].mxu0
        %v461 = vadd.f32 0.0, %v460
        %v462 = vpop.f32.mrb[0].mxu0
        %463 = vmatprep.mubr.f32.mxu0 0.0
        %464 = vmatmul.mubr.f32.gmra.mrb[0].mxu0 %v334
        %v465 = vpop.f32.mrb[0].mxu0
        %v466 = vadd.f32 0.0, %v465
        %v467 = vpop.f32.mrb[0].mxu0
        %468 = vmatprep.mubr.f32.mxu0 0.0
        %469 = vmatmul.mubr.f32.gmra.mrb[0].mxu0 %v337
        %v470 = vpop.f32.mrb[0].mxu0
        %v471 = vadd.f32 0.0, %v470
        %v472 = vpop.f32.mrb[0].mxu0
        %473 = vmatprep.mubr.f32.mxu0 0.0
        %474 = vmatmul.mubr.f32.gmra.mrb[0].mxu0 %v340
        %v475 = vpop.f32.mrb[0].mxu0
        %v476 = vadd.f32 0.0, %v475
        %v477 = vpop.f32.mrb[0].mxu0
        %478 = vmatprep.mubr.f32.mxu0 0.0
        %479 = vmatmul.mubr.f32.gmra.mrb[0].mxu0 %v343
        %v480 = vpop.f32.mrb[0].mxu0
        %v481 = vadd.f32 0.0, %v480
        %v482 = vpop.f32.mrb[0].mxu0
        %483 = vmatprep.mubr.f32.mxu0 0.0
        %484 = vmatmul.mubr.f32.gmra.mrb[0].mxu0 %v346
        %v485 = vpop.f32.mrb[0].mxu0
        %v486 = vadd.f32 0.0, %v485
        %v487 = vpop.f32.mrb[0].mxu0
        %488 = vmatprep.mubr.f32.mxu0 0.0
        %489 = vmatmul.mubr.f32.gmra.mrb[0].mxu0 %v349
        %v490 = vpop.f32.mrb[0].mxu0
        %v491 = vadd.f32 0.0, %v490
        %v492 = vpop.f32.mrb[0].mxu0
        %493 = vmatprep.mubr.f32.mxu0 0.0
        %494 = vmatmul.mubr.f32.gmra.mrb[0].mxu0 %v352
        %v495 = vpop.f32.mrb[0].mxu0
        %v496 = vadd.f32 0.0, %v495
        %v497 = vpop.f32.mrb[0].mxu0
        %498 = vdwg.mxu0
        %v499 = vld [vmem:[%s247] sm:$0xff]
        %v500 = vld [vmem:[%s247 + $0x8] sm:$0xff]
        %v501 = vld [vmem:[%s247 + $0x10] sm:$0xff]
        %v502 = vld [vmem:[%s247 + $0x18] sm:$0xff]
        %v503 = vld [vmem:[%s247 + $0x20] sm:$0xff]
        %v504 = vld [vmem:[%s247 + $0x28] sm:$0xff]
        %v505 = vld [vmem:[%s247 + $0x30] sm:$0xff]
        %v506 = vld [vmem:[%s247 + $0x38] sm:$0xff]
        %v507 = vld [vmem:[%s247 + $0x40] sm:$0xff]
        %v508 = vld [vmem:[%s247 + $0x48] sm:$0xff]
        %v509 = vld [vmem:[%s247 + $0x50] sm:$0xff]
        %v510 = vld [vmem:[%s247 + $0x58] sm:$0xff]
        %v511 = vld [vmem:[%s247 + $0x60] sm:$0xff]
        %v512 = vld [vmem:[%s247 + $0x68] sm:$0xff]
        %v513 = vld [vmem:[%s247 + $0x70] sm:$0xff]
        %v514 = vld [vmem:[%s247 + $0x78] sm:$0xff]
        %v515 = vld [vmem:[%s218] sm:$0xff]
        %v516 = vld [vmem:[%s218 + $0x8] sm:$0xff]
        %v517 = vld [vmem:[%s218 + $0x10] sm:$0xff]
        %v518 = vld [vmem:[%s218 + $0x18] sm:$0xff]
        %v519 = vld [vmem:[%s218 + $0x20] sm:$0xff]
        %v520 = vld [vmem:[%s218 + $0x28] sm:$0xff]
        %v521 = vld [vmem:[%s218 + $0x30] sm:$0xff]
        %v522 = vld [vmem:[%s218 + $0x38] sm:$0xff]
        %v523 = vld [vmem:[%s218 + $0x40] sm:$0xff]
        %v524 = vld [vmem:[%s218 + $0x48] sm:$0xff]
        %v525 = vld [vmem:[%s218 + $0x50] sm:$0xff]
        %v526 = vld [vmem:[%s218 + $0x58] sm:$0xff]
        %v527 = vld [vmem:[%s218 + $0x60] sm:$0xff]
        %v528 = vld [vmem:[%s218 + $0x68] sm:$0xff]
        %v529 = vld [vmem:[%s218 + $0x70] sm:$0xff]
        %v530 = vld [vmem:[%s218 + $0x78] sm:$0xff]
        %531 = vmatprep.subr.mxu0 0.0
        %532 = vmatpush1.msra.mxu0 %v421
        %533 = vmatprep.subr.mxu0 0.0
        %534 = vmatpush1.msra.mxu0 %v426
        %535 = vmatprep.subr.mxu0 0.0
        %536 = vmatpush1.msra.mxu0 %v431
        %537 = vmatprep.subr.mxu0 0.0
        %538 = vmatpush1.msra.mxu0 %v436
        %539 = vmatprep.subr.mxu0 0.0
        %540 = vmatpush1.msra.mxu0 %v441
        %541 = vmatprep.subr.mxu0 0.0
        %542 = vmatpush1.msra.mxu0 %v446
        %543 = vmatprep.subr.mxu0 0.0
        %544 = vmatpush1.msra.mxu0 %v451
        %545 = vmatprep.subr.mxu0 0.0
        %546 = vmatpush1.msra.mxu0 %v456
        %547 = vmatprep.subr.mxu0 0.0
        %548 = vmatpush1.msra.mxu0 %v461
        %549 = vmatprep.subr.mxu0 0.0
        %550 = vmatpush1.msra.mxu0 %v466
        %551 = vmatprep.subr.mxu0 0.0
        %552 = vmatpush1.msra.mxu0 %v471
        %553 = vmatprep.subr.mxu0 0.0
        %554 = vmatpush1.msra.mxu0 %v476
        %555 = vmatprep.subr.mxu0 0.0
        %556 = vmatpush1.msra.mxu0 %v481
        %557 = vmatprep.subr.mxu0 0.0
        %558 = vmatpush1.msra.mxu0 %v486
        %559 = vmatprep.subr.mxu0 0.0
        %560 = vmatpush1.msra.mxu0 %v491
        %561 = vmatprep.subr.mxu0 0.0
        %562 = vmatpush1.msra.mxu0 %v496
        %563 = vmatprep.subr.mxu0 0.0
        %564 = vmatpush1.msra.mxu0 0.0
        %565 = vmatprep.subr.mxu0 0.0
        %566 = vmatpush1.msra.mxu0 0.0
        %567 = vmatprep.subr.mxu0 0.0
        %568 = vmatpush1.msra.mxu0 0.0
        %569 = vmatprep.subr.mxu0 0.0
        %570 = vmatpush1.msra.mxu0 0.0
        %571 = vmatprep.subr.mxu0 0.0
        %572 = vmatpush1.msra.mxu0 0.0
        %573 = vmatprep.subr.mxu0 0.0
        %574 = vmatpush1.msra.mxu0 0.0
        %575 = vmatprep.subr.mxu0 0.0
        %576 = vmatpush1.msra.mxu0 0.0
        %577 = vmatprep.subr.mxu0 0.0
        %578 = vmatpush1.msra.mxu0 0.0
        %579 = vmatprep.subr.mxu0 0.0
        %580 = vmatpush1.msra.mxu0 0.0
        %581 = vmatprep.subr.mxu0 0.0
        %582 = vmatpush1.msra.mxu0 0.0
        %583 = vmatprep.subr.mxu0 0.0
        %584 = vmatpush1.msra.mxu0 0.0
        %585 = vmatprep.subr.mxu0 0.0
        %586 = vmatpush1.msra.mxu0 0.0
        %587 = vmatprep.subr.mxu0 0.0
        %588 = vmatpush1.msra.mxu0 0.0
        %589 = vmatprep.subr.mxu0 0.0
        %590 = vmatpush1.msra.mxu0 0.0
        %591 = vmatprep.subr.mxu0 0.0
        %592 = vmatpush1.msra.mxu0 0.0
        %593 = vmatprep.subr.mxu0 0.0
        %594 = vmatpush1.msra.mxu0 0.0
        %595 = vmatprep.mubr.f32.mxu0 0.0
        %596 = vmatmul.mubr.f32.gmra.mrb[0].mxu0 %v515
        %v597 = vpop.f32.mrb[0].mxu0
        %v598 = vadd.f32 0.0, %v597
        %v599 = vpop.f32.mrb[0].mxu0
        %600 = vmatprep.mubr.f32.mxu0 0.0
        %601 = vmatmul.mubr.f32.gmra.mrb[0].mxu0 %v516
        %v602 = vpop.f32.mrb[0].mxu0
        %v603 = vadd.f32 0.0, %v602
        %v604 = vpop.f32.mrb[0].mxu0
        %605 = vmatprep.mubr.f32.mxu0 0.0
        %606 = vmatmul.mubr.f32.gmra.mrb[0].mxu0 %v517
        %v607 = vpop.f32.mrb[0].mxu0
        %v608 = vadd.f32 0.0, %v607
        %v609 = vpop.f32.mrb[0].mxu0
        %610 = vmatprep.mubr.f32.mxu0 0.0
        %611 = vmatmul.mubr.f32.gmra.mrb[0].mxu0 %v518
        %v612 = vpop.f32.mrb[0].mxu0
        %v613 = vadd.f32 0.0, %v612
        %v614 = vpop.f32.mrb[0].mxu0
        %615 = vmatprep.mubr.f32.mxu0 0.0
        %616 = vmatmul.mubr.f32.gmra.mrb[0].mxu0 %v519
        %v617 = vpop.f32.mrb[0].mxu0
        %v618 = vadd.f32 0.0, %v617
        %v619 = vpop.f32.mrb[0].mxu0
        %620 = vmatprep.mubr.f32.mxu0 0.0
        %621 = vmatmul.mubr.f32.gmra.mrb[0].mxu0 %v520
        %v622 = vpop.f32.mrb[0].mxu0
        %v623 = vadd.f32 0.0, %v622
        %v624 = vpop.f32.mrb[0].mxu0
        %625 = vmatprep.mubr.f32.mxu0 0.0
        %626 = vmatmul.mubr.f32.gmra.mrb[0].mxu0 %v521
        %v627 = vpop.f32.mrb[0].mxu0
        %v628 = vadd.f32 0.0, %v627
        %v629 = vpop.f32.mrb[0].mxu0
        %630 = vmatprep.mubr.f32.mxu0 0.0
        %631 = vmatmul.mubr.f32.gmra.mrb[0].mxu0 %v522
        %v632 = vpop.f32.mrb[0].mxu0
        %v633 = vadd.f32 0.0, %v632
        %v634 = vpop.f32.mrb[0].mxu0
        %635 = vmatprep.mubr.f32.mxu0 0.0
        %636 = vmatmul.mubr.f32.gmra.mrb[0].mxu0 %v523
        %v637 = vpop.f32.mrb[0].mxu0
        %v638 = vadd.f32 0.0, %v637
        %v639 = vpop.f32.mrb[0].mxu0
        %640 = vmatprep.mubr.f32.mxu0 0.0
        %641 = vmatmul.mubr.f32.gmra.mrb[0].mxu0 %v524
        %v642 = vpop.f32.mrb[0].mxu0
        %v643 = vadd.f32 0.0, %v642
        %v644 = vpop.f32.mrb[0].mxu0
        %645 = vmatprep.mubr.f32.mxu0 0.0
        %646 = vmatmul.mubr.f32.gmra.mrb[0].mxu0 %v525
        %v647 = vpop.f32.mrb[0].mxu0
        %v648 = vadd.f32 0.0, %v647
        %v649 = vpop.f32.mrb[0].mxu0
        %650 = vmatprep.mubr.f32.mxu0 0.0
        %651 = vmatmul.mubr.f32.gmra.mrb[0].mxu0 %v526
        %v652 = vpop.f32.mrb[0].mxu0
        %v653 = vadd.f32 0.0, %v652
        %v654 = vpop.f32.mrb[0].mxu0
        %655 = vmatprep.mubr.f32.mxu0 0.0
        %656 = vmatmul.mubr.f32.gmra.mrb[0].mxu0 %v527
        %v657 = vpop.f32.mrb[0].mxu0
        %v658 = vadd.f32 0.0, %v657
        %v659 = vpop.f32.mrb[0].mxu0
        %660 = vmatprep.mubr.f32.mxu0 0.0
        %661 = vmatmul.mubr.f32.gmra.mrb[0].mxu0 %v528
        %v662 = vpop.f32.mrb[0].mxu0
        %v663 = vadd.f32 0.0, %v662
        %v664 = vpop.f32.mrb[0].mxu0
        %665 = vmatprep.mubr.f32.mxu0 0.0
        %666 = vmatmul.mubr.f32.gmra.mrb[0].mxu0 %v529
        %v667 = vpop.f32.mrb[0].mxu0
        %v668 = vadd.f32 0.0, %v667
        %v669 = vpop.f32.mrb[0].mxu0
        %670 = vmatprep.mubr.f32.mxu0 0.0
        %671 = vmatmul.mubr.f32.gmra.mrb[0].mxu0 %v530
        %v672 = vpop.f32.mrb[0].mxu0
        %v673 = vadd.f32 0.0, %v672
        %v674 = vpop.f32.mrb[0].mxu0
        %675 = vdwg.mxu0
        %v676 = vadd.f32 %v499, %v598
        %v677 = vadd.f32 %v500, %v603
        %v678 = vadd.f32 %v501, %v608
        %v679 = vadd.f32 %v502, %v613
        %v680 = vadd.f32 %v503, %v618
        %v681 = vadd.f32 %v504, %v623
        %v682 = vadd.f32 %v505, %v628
        %v683 = vadd.f32 %v506, %v633
        %v684 = vadd.f32 %v507, %v638
        %v685 = vadd.f32 %v508, %v643
        %v686 = vadd.f32 %v509, %v648
        %v687 = vadd.f32 %v510, %v653
        %v688 = vadd.f32 %v511, %v658
        %v689 = vadd.f32 %v512, %v663
        %v690 = vadd.f32 %v513, %v668
        %v691 = vadd.f32 %v514, %v673
        %692 = vst [vmem:[%s247] sm:$0xff] %v676
        %693 = vst [vmem:[%s247 + $0x8] sm:$0xff] %v677
        %694 = vst [vmem:[%s247 + $0x10] sm:$0xff] %v678
        %695 = vst [vmem:[%s247 + $0x18] sm:$0xff] %v679
        %696 = vst [vmem:[%s247 + $0x20] sm:$0xff] %v680
        %697 = vst [vmem:[%s247 + $0x28] sm:$0xff] %v681
        %698 = vst [vmem:[%s247 + $0x30] sm:$0xff] %v682
        %699 = vst [vmem:[%s247 + $0x38] sm:$0xff] %v683
        %700 = vst [vmem:[%s247 + $0x40] sm:$0xff] %v684
        %701 = vst [vmem:[%s247 + $0x48] sm:$0xff] %v685
        %702 = vst [vmem:[%s247 + $0x50] sm:$0xff] %v686
        %703 = vst [vmem:[%s247 + $0x58] sm:$0xff] %v687
        %704 = vst [vmem:[%s247 + $0x60] sm:$0xff] %v688
        %705 = vst [vmem:[%s247 + $0x68] sm:$0xff] %v689
        %706 = vst [vmem:[%s247 + $0x70] sm:$0xff] %v690
        %707 = vst [vmem:[%s247 + $0x78] sm:$0xff] %v691
        %s708 = sand.u32 %s137, 1
        %s709 = scalar_lea.sflag [#allocation4], %s708
        %s710 = sand.u32 %s137, 1
        %s711 = smul.addr %s710, 128
        %s712 = scalar_lea.vmem [#allocation5], %s711
        // Predicated region
        $region45: #{tpu_custom_call.1} parent=35 // pred_check
          %p713 = pneg %p147
        $region46: #{tpu_custom_call.1} parent=35 // pred_check_branch
          %715 = sbr.rel (%p713) target = $region48
        $region47: #{tpu_custom_call.1} parent=35 // pred_region
          %s716 = smul.u32 16, %s25
          %s718 = ssub.s32 2048, 2048
          %719 = vsyncadd %s709, %s718
          %s720 = smul.addr %s716, 128
          %s721 = scalar_lea.hbm %s4, %s720
          %s722 = sshll.u32 %s712, 4
          %s723 = int_to_ptr.vmem [resolvable:$true] %s722
          %728 = dma.vmem_to_hbm [thread:$0]  %s723, 2048, %s721, %s709, 128, 128, 8
        $region48: #{tpu_custom_call.1} parent=35 // pred_fallthru
          _
      $region36: #{tpu_custom_call.1} parent=5 // pred_fallthru
        _
      %p729 = scmp.le.s32.totalorder 2, %s16
      // Predicated region
      $region49: #{tpu_custom_call.1} parent=5 // pred_check
        %p730 = pneg %p729
      $region50: #{tpu_custom_call.1} parent=5 // pred_check_branch
        %732 = sbr.rel (%p730) target = $region52
      $region51: #{tpu_custom_call.1} parent=5 // pred_region
        %s733 = ssub.s32 %s16, 2
        // Predicated region
        $region53: #{tpu_custom_call.1} parent=51 // pred_check
          %p734 = pneg %p153
        $region54: #{tpu_custom_call.1} parent=51 // pred_check_branch
          %736 = sbr.rel (%p734) target = $region56
        $region55: #{tpu_custom_call.1} parent=51 // pred_region
          %s737 = sand.u32 %s138, 1
          %s738 = scalar_lea.sflag [#allocation4], %s737
          %s739 = sand.u32 %s138, 1
          %s740 = smul.addr %s739, 128
          %s741 = scalar_lea.vmem [#allocation5], %s740
          %742 = dma.done %s738, 2048
        $region56: #{tpu_custom_call.1} parent=51 // pred_fallthru
          _
      $region52: #{tpu_custom_call.1} parent=5 // pred_fallthru
        _
    $region6: #{tpu_custom_call.1} parent=1 // loop_footer
      %s20 = sadd.s32 1, %s16
    $region7: #{tpu_custom_call.1} parent=1 // loop_footer_branch
      %15 = sbr.rel target = $region3
    $region8: #{tpu_custom_call.1} parent=1 // loop_exit
      _
    %743 = vsyncpa [#allocation3], 1
    %s744 = scalar_lea.sflag [#allocation3], 1
    %745 = vsyncpa %s744, 1
    %746 = vsyncpa [#allocation4], 1
    %s747 = scalar_lea.sflag [#allocation4], 1
    %748 = vsyncpa %s747, 1

</llo_original>
